<compile_context>
chip_gen: v7x
topology: tpu7x:2x2x1
jax: 0.10.0
libtpu: 0.0.40
codegen_flags: <defaults>
</compile_context>

<pallas_src>
import functools

import jax
import jax.numpy as jnp
from jax import lax
from jax.experimental import pallas as pl
from jax.experimental.pallas import tpu as pltpu


def _round_up(x, m):
    return ((x + m - 1) // m) * m


# ----------------------------------------------------------------------------
# Pallas kernel: fused 4-layer MLP  (Linear -> ReLU) x 3 -> Linear(->1)
# Weights arrive in PyTorch (out_features, in_features) layout; the MXU consumes
# the transposed RHS natively through dot_general (contract last dims of both).
# ----------------------------------------------------------------------------
def _mlp_kernel(x_ref,
                w1_ref, b1_ref,
                w2_ref, b2_ref,
                w3_ref, b3_ref,
                w4_ref, b4_ref,
                o_ref):
    contract_last = (((1,), (1,)), ((), ()))

    def linear(h, w_ref, b_ref):
        # h: (rows, in), w: (out, in)  ->  (rows, out)
        return lax.dot_general(h, w_ref[...], contract_last,
                               preferred_element_type=jnp.float32) + b_ref[...]

    h = jnp.maximum(linear(x_ref[...], w1_ref, b1_ref), 0.0)
    h = jnp.maximum(linear(h, w2_ref, b2_ref), 0.0)
    h = jnp.maximum(linear(h, w3_ref, b3_ref), 0.0)

    # Final layer, emitted lane-dense: (1, DIM) x (TB, DIM)^T -> (1, TB).
    out_row = lax.dot_general(w4_ref[...], h, contract_last,
                              preferred_element_type=jnp.float32) + b4_ref[0, 0]
    o_ref[...] = out_row.astype(o_ref.dtype)


# ----------------------------------------------------------------------------
# Spectral normalization (one power iteration; PyTorch defaults
# n_power_iterations=1, eps=1e-12, F.normalize = x / max(||x||, eps)).
# ----------------------------------------------------------------------------
def _spectral_normalize(w, u, eps=1e-12):
    v = w.T @ u
    v = v / jnp.maximum(jnp.linalg.norm(v), eps)
    u_new = w @ v
    u_new = u_new / jnp.maximum(jnp.linalg.norm(u_new), eps)
    sigma = u_new @ (w @ v)
    return w / sigma
    # TODO(synk): torch's spectral_norm also writes the updated u buffer back
    # in-place during training forwards; state tracking is not reproduced here.


# ----------------------------------------------------------------------------
# Forward wrapper (jitted so the spectral-norm prologue fuses with the kernel)
# ----------------------------------------------------------------------------
def _forward(x, params, *, block_rows=512):
    B, input_dim = x.shape
    dim = params["w1"].shape[0]

    # ---- spectral-norm prologue (plain JAX, fused under the surrounding jit) ----
    w1 = _spectral_normalize(params["w1"], params["u1"])
    w2 = _spectral_normalize(params["w2"], params["u2"])
    w3 = _spectral_normalize(params["w3"], params["u3"])
    w4 = params["w4"]  # last layer has no spectral norm

    b1 = params["b1"][None, :]
    b2 = params["b2"][None, :]
    b3 = params["b3"][None, :]
    b4 = params["b4"].reshape(1, 1)  # single scalar -> SMEM

    # ---- tile / pad the batch (lane-dense output rows, big tiles) ----
    TB = min(block_rows, _round_up(B, 128))
    B_pad = _round_up(B, TB)
    grid = B_pad // TB
    if B_pad != B:
        x = jnp.pad(x, ((0, B_pad - B), (0, 0)))

    const = lambda i: (0, 0)  # weights / biases: same block every grid step (VMEM-resident)

    in_specs = [
        pl.BlockSpec((TB, input_dim), lambda i: (i, 0)),    # x tile
        pl.BlockSpec((dim, input_dim), const),              # w1
        pl.BlockSpec((1, dim), const),                      # b1
        pl.BlockSpec((dim, dim), const),                    # w2
        pl.BlockSpec((1, dim), const),                      # b2
        pl.BlockSpec((dim, dim), const),                    # w3
        pl.BlockSpec((1, dim), const),                      # b3
        pl.BlockSpec((1, dim), const),                      # w4
        pl.BlockSpec(memory_space=pltpu.MemorySpace.SMEM),  # b4 scalar
    ]
    out_specs = pl.BlockSpec((1, TB), lambda i: (i, 0))     # lane-dense (batch along lanes)

    # ---- VMEM budget: double-buffered IO tiles + resident params, with slack.
    # Clamped well under v7x's 64 MiB physical VMEM (v5e/v6e have 128 MiB).
    f32 = 4
    io_tile_bytes = f32 * (TB * input_dim + TB)                     # x tile + out tile
    resident_bytes = f32 * (dim * input_dim + 2 * dim * dim + 4 * dim)
    vmem_limit = int(min(max(4 * io_tile_bytes + 2 * resident_bytes, 32 << 20), 48 << 20))

    flops = 2 * B_pad * (input_dim * dim + 2 * dim * dim + dim)
    bytes_accessed = f32 * (B_pad * input_dim + B_pad
                            + dim * input_dim + 2 * dim * dim + dim + 3 * dim + 1)

    out = pl.pallas_call(
        _mlp_kernel,
        out_shape=jax.ShapeDtypeStruct((grid, TB), jnp.float32),
        grid=(grid,),
        in_specs=in_specs,
        out_specs=out_specs,
        compiler_params=pltpu.CompilerParams(
            dimension_semantics=("parallel",),
            vmem_limit_bytes=vmem_limit),
        cost_estimate=pl.CostEstimate(flops=flops, transcendentals=0,
                                      bytes_accessed=bytes_accessed),
    )(x, w1, b1, w2, b2, w3, b3, w4, b4)

    # (grid, TB) lane-dense slab -> (B,)   [matches torch's output.view(-1)]
    return out.reshape(-1)[:B]


discriminator_sn_forward = jax.jit(_forward, static_argnames=("block_rows",))


# ----------------------------------------------------------------------------
# Deterministic parameter construction (shapes from the PyTorch __init__)
# ----------------------------------------------------------------------------
def init_params(key, DIM, INPUT_DIM):
    ks = jax.random.split(key, 12)

    def linear_init(kw, kb, in_f, out_f):
        bound = 1.0 / jnp.sqrt(in_f)
        w = jax.random.uniform(kw, (out_f, in_f), jnp.float32, -bound, bound)
        b = jax.random.uniform(kb, (out_f,), jnp.float32, -bound, bound)
        return w, b

    w1, b1 = linear_init(ks[0], ks[1], INPUT_DIM, DIM)
    w2, b2 = linear_init(ks[2], ks[3], DIM, DIM)
    w3, b3 = linear_init(ks[4], ks[5], DIM, DIM)
    w4, b4 = linear_init(ks[6], ks[7], DIM, 1)

    def init_u(k, n):
        u = jax.random.normal(k, (n,), jnp.float32)
        return u / jnp.maximum(jnp.linalg.norm(u), 1e-12)

    return {
        "w1": w1, "b1": b1, "u1": init_u(ks[8], DIM),
        "w2": w2, "b2": b2, "u2": init_u(ks[9], DIM),
        "w3": w3, "b3": b3, "u3": init_u(ks[10], DIM),
        "w4": w4, "b4": b4,
    }


# ----------------------------------------------------------------------------
# Pure-JAX reference for a sanity check
# ----------------------------------------------------------------------------
def reference_forward(x, params):
    h = jnp.maximum(x @ _spectral_normalize(params["w1"], params["u1"]).T + params["b1"], 0.0)
    h = jnp.maximum(h @ _spectral_normalize(params["w2"], params["u2"]).T + params["b2"], 0.0)
    h = jnp.maximum(h @ _spectral_normalize(params["w3"], params["u3"]).T + params["b3"], 0.0)
    out = h @ params["w4"].T + params["b4"]
    return out.reshape(-1)


if __name__ == "__main__":
    DIM = 32        # hidden width
    INPUT_DIM = 16  # input feature dim
    B = 8           # batch

    key = jax.random.PRNGKey(0)
    k_params, k_x = jax.random.split(key)
    params = init_params(k_params, DIM, INPUT_DIM)
    x = jax.random.normal(k_x, (B, INPUT_DIM), jnp.float32)

    out = discriminator_sn_forward(x, params)
    out = jax.block_until_ready(out)

    ref = reference_forward(x, params)
    assert out.shape == (B,)
    assert jnp.allclose(out, ref, atol=1e-5, rtol=1e-5)

    print("KERNEL_OK")
</pallas_src>

<mosaic_0001>
module attributes {stable_mosaic.version = 11 : i64} {
  func.func @_mlp_kernel(%arg0: i32, %arg1: memref<128x16xf32, #tpu.memory_space<vmem>>, %arg2: memref<32x16xf32, #tpu.memory_space<vmem>>, %arg3: memref<1x32xf32, #tpu.memory_space<vmem>>, %arg4: memref<32x32xf32, #tpu.memory_space<vmem>>, %arg5: memref<1x32xf32, #tpu.memory_space<vmem>>, %arg6: memref<32x32xf32, #tpu.memory_space<vmem>>, %arg7: memref<1x32xf32, #tpu.memory_space<vmem>>, %arg8: memref<1x32xf32, #tpu.memory_space<vmem>>, %arg9: memref<1x1xf32, #tpu.memory_space<smem>>, %arg10: memref<1x128xf32, #tpu.memory_space<vmem>>) attributes {dimension_semantics = [#tpu.dimension_semantics<parallel>], iteration_bounds = array<i64: 1>, scalar_prefetch = 0 : i64, scratch_operands = 0 : i64, tpu.core_type = #tpu.core_type<tc>, window_params = [{transform_indices = @transform_0, window_bounds = array<i64: 128, 16>}, {pipeline_mode = #tpu.pipeline_mode<synchronous>, transform_indices = @transform_1, window_bounds = array<i64: 32, 16>}, {pipeline_mode = #tpu.pipeline_mode<synchronous>, transform_indices = @transform_2, window_bounds = array<i64: 1, 32>}, {pipeline_mode = #tpu.pipeline_mode<synchronous>, transform_indices = @transform_3, window_bounds = array<i64: 32, 32>}, {pipeline_mode = #tpu.pipeline_mode<synchronous>, transform_indices = @transform_4, window_bounds = array<i64: 1, 32>}, {pipeline_mode = #tpu.pipeline_mode<synchronous>, transform_indices = @transform_5, window_bounds = array<i64: 32, 32>}, {pipeline_mode = #tpu.pipeline_mode<synchronous>, transform_indices = @transform_6, window_bounds = array<i64: 1, 32>}, {pipeline_mode = #tpu.pipeline_mode<synchronous>, transform_indices = @transform_7, window_bounds = array<i64: 1, 32>}, {transform_indices = @transform_8, window_bounds = array<i64: 1, 1>}, {transform_indices = @transform_9, window_bounds = array<i64: 1, 128>}]} {
    %c0 = arith.constant 0 : index
    %c0_0 = arith.constant 0 : index
    %0 = vector.load %arg1[%c0, %c0_0] : memref<128x16xf32, #tpu.memory_space<vmem>>, vector<128x16xf32>
    %c0_1 = arith.constant 0 : index
    %c0_2 = arith.constant 0 : index
    %1 = vector.load %arg2[%c0_1, %c0_2] : memref<32x16xf32, #tpu.memory_space<vmem>>, vector<32x16xf32>
    %cst = arith.constant dense<0.000000e+00> : vector<128x32xf32>
    %2 = tpu.matmul %0, %1, %cst {dimension_numbers = #tpu.dot_dimension_numbers<[1], [1], [0], [0], [0, 0, 1, 0], [], []>} : vector<128x16xf32>, vector<32x16xf32>, vector<128x32xf32> -> vector<128x32xf32>
    %c0_3 = arith.constant 0 : index
    %c0_4 = arith.constant 0 : index
    %3 = vector.load %arg3[%c0_3, %c0_4] : memref<1x32xf32, #tpu.memory_space<vmem>>, vector<1x32xf32>
    %4 = vector.broadcast %3 : vector<1x32xf32> to vector<128x32xf32>
    %5 = arith.addf %2, %4 : vector<128x32xf32>
    %cst_5 = arith.constant 0.000000e+00 : f32
    %6 = vector.broadcast %cst_5 : f32 to vector<128x32xf32>
    %7 = arith.maximumf %5, %6 : vector<128x32xf32>
    %c0_6 = arith.constant 0 : index
    %c0_7 = arith.constant 0 : index
    %8 = vector.load %arg4[%c0_6, %c0_7] : memref<32x32xf32, #tpu.memory_space<vmem>>, vector<32x32xf32>
    %cst_8 = arith.constant dense<0.000000e+00> : vector<128x32xf32>
    %9 = tpu.matmul %7, %8, %cst_8 {dimension_numbers = #tpu.dot_dimension_numbers<[1], [1], [0], [0], [0, 0, 1, 0], [], []>} : vector<128x32xf32>, vector<32x32xf32>, vector<128x32xf32> -> vector<128x32xf32>
    %c0_9 = arith.constant 0 : index
    %c0_10 = arith.constant 0 : index
    %10 = vector.load %arg5[%c0_9, %c0_10] : memref<1x32xf32, #tpu.memory_space<vmem>>, vector<1x32xf32>
    %11 = vector.broadcast %10 : vector<1x32xf32> to vector<128x32xf32>
    %12 = arith.addf %9, %11 : vector<128x32xf32>
    %cst_11 = arith.constant 0.000000e+00 : f32
    %13 = vector.broadcast %cst_11 : f32 to vector<128x32xf32>
    %14 = arith.maximumf %12, %13 : vector<128x32xf32>
    %c0_12 = arith.constant 0 : index
    %c0_13 = arith.constant 0 : index
    %15 = vector.load %arg6[%c0_12, %c0_13] : memref<32x32xf32, #tpu.memory_space<vmem>>, vector<32x32xf32>
    %cst_14 = arith.constant dense<0.000000e+00> : vector<128x32xf32>
    %16 = tpu.matmul %14, %15, %cst_14 {dimension_numbers = #tpu.dot_dimension_numbers<[1], [1], [0], [0], [0, 0, 1, 0], [], []>} : vector<128x32xf32>, vector<32x32xf32>, vector<128x32xf32> -> vector<128x32xf32>
    %c0_15 = arith.constant 0 : index
    %c0_16 = arith.constant 0 : index
    %17 = vector.load %arg7[%c0_15, %c0_16] : memref<1x32xf32, #tpu.memory_space<vmem>>, vector<1x32xf32>
    %18 = vector.broadcast %17 : vector<1x32xf32> to vector<128x32xf32>
    %19 = arith.addf %16, %18 : vector<128x32xf32>
    %cst_17 = arith.constant 0.000000e+00 : f32
    %20 = vector.broadcast %cst_17 : f32 to vector<128x32xf32>
    %21 = arith.maximumf %19, %20 : vector<128x32xf32>
    %c0_18 = arith.constant 0 : index
    %c0_19 = arith.constant 0 : index
    %22 = vector.load %arg8[%c0_18, %c0_19] : memref<1x32xf32, #tpu.memory_space<vmem>>, vector<1x32xf32>
    %cst_20 = arith.constant dense<0.000000e+00> : vector<1x128xf32>
    %23 = tpu.matmul %22, %21, %cst_20 {dimension_numbers = #tpu.dot_dimension_numbers<[1], [1], [0], [0], [0, 0, 1, 0], [], []>} : vector<1x32xf32>, vector<128x32xf32>, vector<1x128xf32> -> vector<1x128xf32>
    %c0_21 = arith.constant 0 : index
    %c0_22 = arith.constant 0 : index
    %24 = memref.load %arg9[%c0_21, %c0_22] : memref<1x1xf32, #tpu.memory_space<smem>>
    %25 = vector.broadcast %24 : f32 to vector<1x128xf32>
    %26 = arith.addf %23, %25 : vector<1x128xf32>
    %c0_23 = arith.constant 0 : index
    %c0_24 = arith.constant 0 : index
    %27 = vector.load %arg10[%c0_23, %c0_24] : memref<1x128xf32, #tpu.memory_space<vmem>>, vector<1x128xf32>
    tpu.vector_store %arg10[%c0_23, %c0_24], %26 {strides = array<i32>} : memref<1x128xf32, #tpu.memory_space<vmem>>, vector<1x128xf32>,
    return
  }
  func.func @transform_0(%arg0: i32) -> (i32, i32) {
    %c0_i32 = arith.constant 0 : i32
    %c0_i32_0 = arith.constant 0 : i32
    return %arg0, %c0_i32 : i32, i32
  }
  func.func @transform_1(%arg0: i32) -> (i32, i32) {
    %c0_i32 = arith.constant 0 : i32
    %c0_i32_0 = arith.constant 0 : i32
    %c0_i32_1 = arith.constant 0 : i32
    return %c0_i32, %c0_i32_0 : i32, i32
  }
  func.func @transform_2(%arg0: i32) -> (i32, i32) {
    %c0_i32 = arith.constant 0 : i32
    %c0_i32_0 = arith.constant 0 : i32
    %c0_i32_1 = arith.constant 0 : i32
    return %c0_i32, %c0_i32_0 : i32, i32
  }
  func.func @transform_3(%arg0: i32) -> (i32, i32) {
    %c0_i32 = arith.constant 0 : i32
    %c0_i32_0 = arith.constant 0 : i32
    %c0_i32_1 = arith.constant 0 : i32
    return %c0_i32, %c0_i32_0 : i32, i32
  }
  func.func @transform_4(%arg0: i32) -> (i32, i32) {
    %c0_i32 = arith.constant 0 : i32
    %c0_i32_0 = arith.constant 0 : i32
    %c0_i32_1 = arith.constant 0 : i32
    return %c0_i32, %c0_i32_0 : i32, i32
  }
  func.func @transform_5(%arg0: i32) -> (i32, i32) {
    %c0_i32 = arith.constant 0 : i32
    %c0_i32_0 = arith.constant 0 : i32
    %c0_i32_1 = arith.constant 0 : i32
    return %c0_i32, %c0_i32_0 : i32, i32
  }
  func.func @transform_6(%arg0: i32) -> (i32, i32) {
    %c0_i32 = arith.constant 0 : i32
    %c0_i32_0 = arith.constant 0 : i32
    %c0_i32_1 = arith.constant 0 : i32
    return %c0_i32, %c0_i32_0 : i32, i32
  }
  func.func @transform_7(%arg0: i32) -> (i32, i32) {
    %c0_i32 = arith.constant 0 : i32
    %c0_i32_0 = arith.constant 0 : i32
    %c0_i32_1 = arith.constant 0 : i32
    return %c0_i32, %c0_i32_0 : i32, i32
  }
  func.func @transform_8(%arg0: i32) -> (i32, i32) {
    %c0_i32 = arith.constant 0 : i32
    %c0_i32_0 = arith.constant 0 : i32
    %c0_i32_1 = arith.constant 0 : i32
    return %c0_i32, %c0_i32_0 : i32, i32
  }
  func.func @transform_9(%arg0: i32) -> (i32, i32) {
    %c0_i32 = arith.constant 0 : i32
    %c0_i32_0 = arith.constant 0 : i32
    return %arg0, %c0_i32 : i32, i32
  }
}

</mosaic_0001>

<llo_original>
// kernel: _forward.1
$region0: #{_forward.1}
  #allocation0 [shape = 'u32[]', space=smem, size = 0x4, offset = 0x4, fixed_abs, tag = 'smem constant byte address 0x4 - core index']
  #allocation1 [shape = 'u32[144,128]{1,0:T(1,128)}', space=vmem, size = 0x12000, scoped, tag = 'internal scratch']
  #allocation2 [shape = 'f32[1,1]{1,0:T(1,128)S(6)}', space=smem, size = 0x200, scoped, tag = 'scoped memory for _forward.1']
  %s0 = inlined_call_operand.vmem [shape: f32[128,16], index: 0, kind: input, shape index: {}]
  %s1 = inlined_call_operand.vmem [shape: f32[32,16], index: 1, kind: input, shape index: {}]
  %s2 = inlined_call_operand.vmem [shape: f32[1,32], index: 2, kind: input, shape index: {}]
  %s3 = inlined_call_operand.vmem [shape: f32[32,32], index: 3, kind: input, shape index: {}]
  %s4 = inlined_call_operand.vmem [shape: f32[1,32], index: 4, kind: input, shape index: {}]
  %s5 = inlined_call_operand.vmem [shape: f32[32,32], index: 5, kind: input, shape index: {}]
  %s6 = inlined_call_operand.vmem [shape: f32[1,32], index: 6, kind: input, shape index: {}]
  %s7 = inlined_call_operand.vmem [shape: f32[1,32], index: 7, kind: input, shape index: {}]
  %s8 = inlined_call_operand.<no memory space> [shape: f32[1,1], index: 8, kind: input, shape index: {}]
  %s9 = inlined_call_operand.vmem [shape: f32[1,128], index: 9, kind: output, shape index: {}]
  %s10 = sld [smem:[#allocation0]]
  $region46: #{_forward.1} parent=0
    _
  %s12 = ssub.s32 1, %s10
  %s13 = scalar_select 0, %s12, %s10
  %14 = sst [smem:[#allocation2]] %s8
  // Predicated region
  $region2: #{_forward.1} parent=0 // pred_check
    _
  $region3: #{_forward.1} parent=0 // pred_check_branch
    %16 = sbr.rel (0) target = $region5
  $region4: #{_forward.1} parent=0 // pred_region
    _
  $region5: #{_forward.1} parent=0 // pred_fallthru
    _
  // Predicated region
  $region6: #{_forward.1} parent=0 // pred_check
    _
  $region7: #{_forward.1} parent=0 // pred_check_branch
    %18 = sbr.rel (0) target = $region9
  $region8: #{_forward.1} parent=0 // pred_region
    _
  $region9: #{_forward.1} parent=0 // pred_fallthru
    _
  // Predicated region
  $region10: #{_forward.1} parent=0 // pred_check
    _
  $region11: #{_forward.1} parent=0 // pred_check_branch
    %20 = sbr.rel (0) target = $region13
  $region12: #{_forward.1} parent=0 // pred_region
    _
  $region13: #{_forward.1} parent=0 // pred_fallthru
    _
  // Predicated region
  $region14: #{_forward.1} parent=0 // pred_check
    _
  $region15: #{_forward.1} parent=0 // pred_check_branch
    %22 = sbr.rel (0) target = $region17
  $region16: #{_forward.1} parent=0 // pred_region
    _
  $region17: #{_forward.1} parent=0 // pred_fallthru
    _
  // Predicated region
  $region18: #{_forward.1} parent=0 // pred_check
    _
  $region19: #{_forward.1} parent=0 // pred_check_branch
    %24 = sbr.rel (0) target = $region21
  $region20: #{_forward.1} parent=0 // pred_region
    _
  $region21: #{_forward.1} parent=0 // pred_fallthru
    _
  // Predicated region
  $region22: #{_forward.1} parent=0 // pred_check
    _
  $region23: #{_forward.1} parent=0 // pred_check_branch
    %26 = sbr.rel (0) target = $region25
  $region24: #{_forward.1} parent=0 // pred_region
    _
  $region25: #{_forward.1} parent=0 // pred_fallthru
    _
  // Predicated region
  $region26: #{_forward.1} parent=0 // pred_check
    _
  $region27: #{_forward.1} parent=0 // pred_check_branch
    %28 = sbr.rel (0) target = $region29
  $region28: #{_forward.1} parent=0 // pred_region
    _
  $region29: #{_forward.1} parent=0 // pred_fallthru
    _
  // Predicated region
  $region30: #{_forward.1} parent=0 // pred_check
    _
  $region31: #{_forward.1} parent=0 // pred_check_branch
    %30 = sbr.rel (0) target = $region33
  $region32: #{_forward.1} parent=0 // pred_region
    _
  $region33: #{_forward.1} parent=0 // pred_fallthru
    _
  // Predicated region
  $region34: #{_forward.1} parent=0 // pred_check
    _
  $region35: #{_forward.1} parent=0 // pred_check_branch
    %32 = sbr.rel (0) target = $region37
  $region36: #{_forward.1} parent=0 // pred_region
    _
  $region37: #{_forward.1} parent=0 // pred_fallthru
    _
  %v33 = vld [vmem:[%s0] sm:$0xff]
  %v34 = vld [vmem:[%s0 + $0x8] sm:$0xff]
  %v35 = vld [vmem:[%s0 + $0x10] sm:$0xff]
  %v36 = vld [vmem:[%s0 + $0x18] sm:$0xff]
  %v37 = vld [vmem:[%s0 + $0x20] sm:$0xff]
  %v38 = vld [vmem:[%s0 + $0x28] sm:$0xff]
  %v39 = vld [vmem:[%s0 + $0x30] sm:$0xff]
  %v40 = vld [vmem:[%s0 + $0x38] sm:$0xff]
  %v41 = vld [vmem:[%s0 + $0x40] sm:$0xff]
  %v42 = vld [vmem:[%s0 + $0x48] sm:$0xff]
  %v43 = vld [vmem:[%s0 + $0x50] sm:$0xff]
  %v44 = vld [vmem:[%s0 + $0x58] sm:$0xff]
  %v45 = vld [vmem:[%s0 + $0x60] sm:$0xff]
  %v46 = vld [vmem:[%s0 + $0x68] sm:$0xff]
  %v47 = vld [vmem:[%s0 + $0x70] sm:$0xff]
  %v48 = vld [vmem:[%s0 + $0x78] sm:$0xff]
  %v49 = vld [vmem:[%s1] sm:$0xff]
  %v50 = vld [vmem:[%s1 + $0x8] sm:$0xff]
  %v51 = vld [vmem:[%s1 + $0x10] sm:$0xff]
  %v52 = vld [vmem:[%s1 + $0x18] sm:$0xff]
  %v53 = vld [vmem:[%s2] sm:$0x1]
  %v55 = vlaneseq
  %v56 = vshrl.u32 %v55, 7
  %v57 = vsub.s32 0, %v56
  %v58 = vrot.slane %v53, %v57
  %vm60 = vcmask 130048
  %v62 = vsel %vm60, %v33, 0
  %v65 = vsel %vm60, %v34, 0
  %v68 = vsel %vm60, %v35, 0
  %v71 = vsel %vm60, %v36, 0
  %v74 = vsel %vm60, %v37, 0
  %v77 = vsel %vm60, %v38, 0
  %v80 = vsel %vm60, %v39, 0
  %v83 = vsel %vm60, %v40, 0
  %v86 = vsel %vm60, %v41, 0
  %v89 = vsel %vm60, %v42, 0
  %v92 = vsel %vm60, %v43, 0
  %v95 = vsel %vm60, %v44, 0
  %v98 = vsel %vm60, %v45, 0
  %v101 = vsel %vm60, %v46, 0
  %v104 = vsel %vm60, %v47, 0
  %v107 = vsel %vm60, %v48, 0
  %v110 = vsel %vm60, %v49, 0
  %v113 = vsel %vm60, %v50, 0
  %v116 = vsel %vm60, %v51, 0
  %v119 = vsel %vm60, %v52, 0
  %121 = vmatprep.subr.mxu0 0.0
  %122 = vmatpush1.xpose.msra.mxu0 %v110
  %123 = vmatprep.subr.mxu0 0.0
  %124 = vmatpush1.xpose.msra.mxu0 %v113
  %125 = vmatprep.subr.mxu0 0.0
  %126 = vmatpush1.xpose.msra.mxu0 %v116
  %127 = vmatprep.subr.mxu0 0.0
  %128 = vmatpush1.xpose.msra.mxu0 %v119
  %129 = vmatprep.subr.mxu0 0.0
  %130 = vmatpush1.xpose.msra.mxu0 0.0
  %131 = vmatprep.subr.mxu0 0.0
  %132 = vmatpush1.xpose.msra.mxu0 0.0
  %133 = vmatprep.subr.mxu0 0.0
  %134 = vmatpush1.xpose.msra.mxu0 0.0
  %135 = vmatprep.subr.mxu0 0.0
  %136 = vmatpush1.xpose.msra.mxu0 0.0
  %137 = vmatprep.subr.mxu0 0.0
  %138 = vmatpush1.xpose.msra.mxu0 0.0
  %139 = vmatprep.subr.mxu0 0.0
  %140 = vmatpush1.xpose.msra.mxu0 0.0
  %141 = vmatprep.subr.mxu0 0.0
  %142 = vmatpush1.xpose.msra.mxu0 0.0
  %143 = vmatprep.subr.mxu0 0.0
  %144 = vmatpush1.xpose.msra.mxu0 0.0
  %145 = vmatprep.subr.mxu0 0.0
  %146 = vmatpush1.xpose.msra.mxu0 0.0
  %147 = vmatprep.subr.mxu0 0.0
  %148 = vmatpush1.xpose.msra.mxu0 0.0
  %149 = vmatprep.subr.mxu0 0.0
  %150 = vmatpush1.xpose.msra.mxu0 0.0
  %151 = vmatprep.subr.mxu0 0.0
  %152 = vmatpush1.xpose.msra.mxu0 0.0
  %153 = vmatprep.subr.mxu0 0.0
  %154 = vmatpush1.xpose.msra.mxu0 0.0
  %155 = vmatprep.subr.mxu0 0.0
  %156 = vmatpush1.xpose.msra.mxu0 0.0
  %157 = vmatprep.subr.mxu0 0.0
  %158 = vmatpush1.xpose.msra.mxu0 0.0
  %159 = vmatprep.subr.mxu0 0.0
  %160 = vmatpush1.xpose.msra.mxu0 0.0
  %161 = vmatprep.subr.mxu0 0.0
  %162 = vmatpush1.xpose.msra.mxu0 0.0
  %163 = vmatprep.subr.mxu0 0.0
  %164 = vmatpush1.xpose.msra.mxu0 0.0
  %165 = vmatprep.subr.mxu0 0.0
  %166 = vmatpush1.xpose.msra.mxu0 0.0
  %167 = vmatprep.subr.mxu0 0.0
  %168 = vmatpush1.xpose.msra.mxu0 0.0
  %169 = vmatprep.subr.mxu0 0.0
  %170 = vmatpush1.xpose.msra.mxu0 0.0
  %171 = vmatprep.subr.mxu0 0.0
  %172 = vmatpush1.xpose.msra.mxu0 0.0
  %173 = vmatprep.subr.mxu0 0.0
  %174 = vmatpush1.xpose.msra.mxu0 0.0
  %175 = vmatprep.subr.mxu0 0.0
  %176 = vmatpush1.xpose.msra.mxu0 0.0
  %177 = vmatprep.subr.mxu0 0.0
  %178 = vmatpush1.xpose.msra.mxu0 0.0
  %179 = vmatprep.subr.mxu0 0.0
  %180 = vmatpush1.xpose.msra.mxu0 0.0
  %181 = vmatprep.subr.mxu0 0.0
  %182 = vmatpush1.xpose.msra.mxu0 0.0
  %183 = vmatprep.subr.mxu0 0.0
  %184 = vmatpush1.xpose.msra.mxu0 0.0
  %185 = vmatprep.mubr.f32.mxu0 0.0
  %186 = vmatmul.mubr.f32.gmra.mrb[0].mxu0 %v62
  %v187 = vpop.f32.mrb[0].mxu0
  %v188 = vadd.f32 %v58, %v187
  %v189 = vpop.f32.mrb[0].mxu0
  %190 = vmatprep.mubr.f32.mxu0 0.0
  %191 = vmatmul.mubr.f32.gmra.mrb[0].mxu0 %v65
  %v192 = vpop.f32.mrb[0].mxu0
  %v193 = vadd.f32 %v58, %v192
  %v194 = vpop.f32.mrb[0].mxu0
  %195 = vmatprep.mubr.f32.mxu0 0.0
  %196 = vmatmul.mubr.f32.gmra.mrb[0].mxu0 %v68
  %v197 = vpop.f32.mrb[0].mxu0
  %v198 = vadd.f32 %v58, %v197
  %v199 = vpop.f32.mrb[0].mxu0
  %200 = vmatprep.mubr.f32.mxu0 0.0
  %201 = vmatmul.mubr.f32.gmra.mrb[0].mxu0 %v71
  %v202 = vpop.f32.mrb[0].mxu0
  %v203 = vadd.f32 %v58, %v202
  %v204 = vpop.f32.mrb[0].mxu0
  %205 = vmatprep.mubr.f32.mxu0 0.0
  %206 = vmatmul.mubr.f32.gmra.mrb[0].mxu0 %v74
  %v207 = vpop.f32.mrb[0].mxu0
  %v208 = vadd.f32 %v58, %v207
  %v209 = vpop.f32.mrb[0].mxu0
  %210 = vmatprep.mubr.f32.mxu0 0.0
  %211 = vmatmul.mubr.f32.gmra.mrb[0].mxu0 %v77
  %v212 = vpop.f32.mrb[0].mxu0
  %v213 = vadd.f32 %v58, %v212
  %v214 = vpop.f32.mrb[0].mxu0
  %215 = vmatprep.mubr.f32.mxu0 0.0
  %216 = vmatmul.mubr.f32.gmra.mrb[0].mxu0 %v80
  %v217 = vpop.f32.mrb[0].mxu0
  %v218 = vadd.f32 %v58, %v217
  %v219 = vpop.f32.mrb[0].mxu0
  %220 = vmatprep.mubr.f32.mxu0 0.0
  %221 = vmatmul.mubr.f32.gmra.mrb[0].mxu0 %v83
  %v222 = vpop.f32.mrb[0].mxu0
  %v223 = vadd.f32 %v58, %v222
  %v224 = vpop.f32.mrb[0].mxu0
  %225 = vmatprep.mubr.f32.mxu0 0.0
  %226 = vmatmul.mubr.f32.gmra.mrb[0].mxu0 %v86
  %v227 = vpop.f32.mrb[0].mxu0
  %v228 = vadd.f32 %v58, %v227
  %v229 = vpop.f32.mrb[0].mxu0
  %230 = vmatprep.mubr.f32.mxu0 0.0
  %231 = vmatmul.mubr.f32.gmra.mrb[0].mxu0 %v89
  %v232 = vpop.f32.mrb[0].mxu0
  %v233 = vadd.f32 %v58, %v232
  %v234 = vpop.f32.mrb[0].mxu0
  %235 = vmatprep.mubr.f32.mxu0 0.0
  %236 = vmatmul.mubr.f32.gmra.mrb[0].mxu0 %v92
  %v237 = vpop.f32.mrb[0].mxu0
  %v238 = vadd.f32 %v58, %v237
  %v239 = vpop.f32.mrb[0].mxu0
  %240 = vmatprep.mubr.f32.mxu0 0.0
  %241 = vmatmul.mubr.f32.gmra.mrb[0].mxu0 %v95
  %v242 = vpop.f32.mrb[0].mxu0
  %v243 = vadd.f32 %v58, %v242
  %v244 = vpop.f32.mrb[0].mxu0
  %245 = vmatprep.mubr.f32.mxu0 0.0
  %246 = vmatmul.mubr.f32.gmra.mrb[0].mxu0 %v98
  %v247 = vpop.f32.mrb[0].mxu0
  %v248 = vadd.f32 %v58, %v247
  %v249 = vpop.f32.mrb[0].mxu0
  %250 = vmatprep.mubr.f32.mxu0 0.0
  %251 = vmatmul.mubr.f32.gmra.mrb[0].mxu0 %v101
  %v252 = vpop.f32.mrb[0].mxu0
  %v253 = vadd.f32 %v58, %v252
  %v254 = vpop.f32.mrb[0].mxu0
  %255 = vmatprep.mubr.f32.mxu0 0.0
  %256 = vmatmul.mubr.f32.gmra.mrb[0].mxu0 %v104
  %v257 = vpop.f32.mrb[0].mxu0
  %v258 = vadd.f32 %v58, %v257
  %v259 = vpop.f32.mrb[0].mxu0
  %260 = vmatprep.mubr.f32.mxu0 0.0
  %261 = vmatmul.mubr.f32.gmra.mrb[0].mxu0 %v107
  %v262 = vpop.f32.mrb[0].mxu0
  %v263 = vadd.f32 %v58, %v262
  %v264 = vpop.f32.mrb[0].mxu0
  %265 = vdwg.mxu0
  %v266 = vmax.f32 %v188, 0.0
  %v267 = vmax.f32 %v193, 0.0
  %v268 = vmax.f32 %v198, 0.0
  %v269 = vmax.f32 %v203, 0.0
  %v270 = vmax.f32 %v208, 0.0
  %v271 = vmax.f32 %v213, 0.0
  %v272 = vmax.f32 %v218, 0.0
  %v273 = vmax.f32 %v223, 0.0
  %v274 = vmax.f32 %v228, 0.0
  %v275 = vmax.f32 %v233, 0.0
  %v276 = vmax.f32 %v238, 0.0
  %v277 = vmax.f32 %v243, 0.0
  %v278 = vmax.f32 %v248, 0.0
  %v279 = vmax.f32 %v253, 0.0
  %v280 = vmax.f32 %v258, 0.0
  %v281 = vmax.f32 %v263, 0.0
  %v282 = vld [vmem:[%s3] sm:$0xff]
  %v283 = vld [vmem:[%s3 + $0x8] sm:$0xff]
  %v284 = vld [vmem:[%s3 + $0x10] sm:$0xff]
  %v285 = vld [vmem:[%s3 + $0x18] sm:$0xff]
  %v286 = vld [vmem:[%s4] sm:$0x1]
  %v288 = vlaneseq
  %v289 = vshrl.u32 %v288, 7
  %v290 = vsub.s32 0, %v289
  %v291 = vrot.slane %v286, %v290
  %vm293 = vcmask 261120
  %v295 = vsel %vm293, %v266, 0
  %v298 = vsel %vm293, %v267, 0
  %v301 = vsel %vm293, %v268, 0
  %v304 = vsel %vm293, %v269, 0
  %v307 = vsel %vm293, %v270, 0
  %v310 = vsel %vm293, %v271, 0
  %v313 = vsel %vm293, %v272, 0
  %v316 = vsel %vm293, %v273, 0
  %v319 = vsel %vm293, %v274, 0
  %v322 = vsel %vm293, %v275, 0
  %v325 = vsel %vm293, %v276, 0
  %v328 = vsel %vm293, %v277, 0
  %v331 = vsel %vm293, %v278, 0
  %v334 = vsel %vm293, %v279, 0
  %v337 = vsel %vm293, %v280, 0
  %v340 = vsel %vm293, %v281, 0
  %v343 = vsel %vm293, %v282, 0
  %v346 = vsel %vm293, %v283, 0
  %v349 = vsel %vm293, %v284, 0
  %v352 = vsel %vm293, %v285, 0
  %354 = vmatprep.subr.mxu0 0.0
  %355 = vmatpush1.xpose.msra.mxu0 %v343
  %356 = vmatprep.subr.mxu0 0.0
  %357 = vmatpush1.xpose.msra.mxu0 %v346
  %358 = vmatprep.subr.mxu0 0.0
  %359 = vmatpush1.xpose.msra.mxu0 %v349
  %360 = vmatprep.subr.mxu0 0.0
  %361 = vmatpush1.xpose.msra.mxu0 %v352
  %362 = vmatprep.subr.mxu0 0.0
  %363 = vmatpush1.xpose.msra.mxu0 0.0
  %364 = vmatprep.subr.mxu0 0.0
  %365 = vmatpush1.xpose.msra.mxu0 0.0
  %366 = vmatprep.subr.mxu0 0.0
  %367 = vmatpush1.xpose.msra.mxu0 0.0
  %368 = vmatprep.subr.mxu0 0.0
  %369 = vmatpush1.xpose.msra.mxu0 0.0
  %370 = vmatprep.subr.mxu0 0.0
  %371 = vmatpush1.xpose.msra.mxu0 0.0
  %372 = vmatprep.subr.mxu0 0.0
  %373 = vmatpush1.xpose.msra.mxu0 0.0
  %374 = vmatprep.subr.mxu0 0.0
  %375 = vmatpush1.xpose.msra.mxu0 0.0
  %376 = vmatprep.subr.mxu0 0.0
  %377 = vmatpush1.xpose.msra.mxu0 0.0
  %378 = vmatprep.subr.mxu0 0.0
  %379 = vmatpush1.xpose.msra.mxu0 0.0
  %380 = vmatprep.subr.mxu0 0.0
  %381 = vmatpush1.xpose.msra.mxu0 0.0
  %382 = vmatprep.subr.mxu0 0.0
  %383 = vmatpush1.xpose.msra.mxu0 0.0
  %384 = vmatprep.subr.mxu0 0.0
  %385 = vmatpush1.xpose.msra.mxu0 0.0
  %386 = vmatprep.subr.mxu0 0.0
  %387 = vmatpush1.xpose.msra.mxu0 0.0
  %388 = vmatprep.subr.mxu0 0.0
  %389 = vmatpush1.xpose.msra.mxu0 0.0
  %390 = vmatprep.subr.mxu0 0.0
  %391 = vmatpush1.xpose.msra.mxu0 0.0
  %392 = vmatprep.subr.mxu0 0.0
  %393 = vmatpush1.xpose.msra.mxu0 0.0
  %394 = vmatprep.subr.mxu0 0.0
  %395 = vmatpush1.xpose.msra.mxu0 0.0
  %396 = vmatprep.subr.mxu0 0.0
  %397 = vmatpush1.xpose.msra.mxu0 0.0
  %398 = vmatprep.subr.mxu0 0.0
  %399 = vmatpush1.xpose.msra.mxu0 0.0
  %400 = vmatprep.subr.mxu0 0.0
  %401 = vmatpush1.xpose.msra.mxu0 0.0
  %402 = vmatprep.subr.mxu0 0.0
  %403 = vmatpush1.xpose.msra.mxu0 0.0
  %404 = vmatprep.subr.mxu0 0.0
  %405 = vmatpush1.xpose.msra.mxu0 0.0
  %406 = vmatprep.subr.mxu0 0.0
  %407 = vmatpush1.xpose.msra.mxu0 0.0
  %408 = vmatprep.subr.mxu0 0.0
  %409 = vmatpush1.xpose.msra.mxu0 0.0
  %410 = vmatprep.subr.mxu0 0.0
  %411 = vmatpush1.xpose.msra.mxu0 0.0
  %412 = vmatprep.subr.mxu0 0.0
  %413 = vmatpush1.xpose.msra.mxu0 0.0
  %414 = vmatprep.subr.mxu0 0.0
  %415 = vmatpush1.xpose.msra.mxu0 0.0
  %416 = vmatprep.subr.mxu0 0.0
  %417 = vmatpush1.xpose.msra.mxu0 0.0
  %418 = vmatprep.mubr.f32.mxu0 0.0
  %419 = vmatmul.mubr.f32.gmra.mrb[0].mxu0 %v295
  %v420 = vpop.f32.mrb[0].mxu0
  %v421 = vadd.f32 %v291, %v420
  %v422 = vpop.f32.mrb[0].mxu0
  %423 = vmatprep.mubr.f32.mxu0 0.0
  %424 = vmatmul.mubr.f32.gmra.mrb[0].mxu0 %v298
  %v425 = vpop.f32.mrb[0].mxu0
  %v426 = vadd.f32 %v291, %v425
  %v427 = vpop.f32.mrb[0].mxu0
  %428 = vmatprep.mubr.f32.mxu0 0.0
  %429 = vmatmul.mubr.f32.gmra.mrb[0].mxu0 %v301
  %v430 = vpop.f32.mrb[0].mxu0
  %v431 = vadd.f32 %v291, %v430
  %v432 = vpop.f32.mrb[0].mxu0
  %433 = vmatprep.mubr.f32.mxu0 0.0
  %434 = vmatmul.mubr.f32.gmra.mrb[0].mxu0 %v304
  %v435 = vpop.f32.mrb[0].mxu0
  %v436 = vadd.f32 %v291, %v435
  %v437 = vpop.f32.mrb[0].mxu0
  %438 = vmatprep.mubr.f32.mxu0 0.0
  %439 = vmatmul.mubr.f32.gmra.mrb[0].mxu0 %v307
  %v440 = vpop.f32.mrb[0].mxu0
  %v441 = vadd.f32 %v291, %v440
  %v442 = vpop.f32.mrb[0].mxu0
  %443 = vmatprep.mubr.f32.mxu0 0.0
  %444 = vmatmul.mubr.f32.gmra.mrb[0].mxu0 %v310
  %v445 = vpop.f32.mrb[0].mxu0
  %v446 = vadd.f32 %v291, %v445
  %v447 = vpop.f32.mrb[0].mxu0
  %448 = vmatprep.mubr.f32.mxu0 0.0
  %449 = vmatmul.mubr.f32.gmra.mrb[0].mxu0 %v313
  %v450 = vpop.f32.mrb[0].mxu0
  %v451 = vadd.f32 %v291, %v450
  %v452 = vpop.f32.mrb[0].mxu0
  %453 = vmatprep.mubr.f32.mxu0 0.0
  %454 = vmatmul.mubr.f32.gmra.mrb[0].mxu0 %v316
  %v455 = vpop.f32.mrb[0].mxu0
  %v456 = vadd.f32 %v291, %v455
  %v457 = vpop.f32.mrb[0].mxu0
  %458 = vmatprep.mubr.f32.mxu0 0.0
  %459 = vmatmul.mubr.f32.gmra.mrb[0].mxu0 %v319
  %v460 = vpop.f32.mrb[0].mxu0
  %v461 = vadd.f32 %v291, %v460
  %v462 = vpop.f32.mrb[0].mxu0
  %463 = vmatprep.mubr.f32.mxu0 0.0
  %464 = vmatmul.mubr.f32.gmra.mrb[0].mxu0 %v322
  %v465 = vpop.f32.mrb[0].mxu0
  %v466 = vadd.f32 %v291, %v465
  %v467 = vpop.f32.mrb[0].mxu0
  %468 = vmatprep.mubr.f32.mxu0 0.0
  %469 = vmatmul.mubr.f32.gmra.mrb[0].mxu0 %v325
  %v470 = vpop.f32.mrb[0].mxu0
  %v471 = vadd.f32 %v291, %v470
  %v472 = vpop.f32.mrb[0].mxu0
  %473 = vmatprep.mubr.f32.mxu0 0.0
  %474 = vmatmul.mubr.f32.gmra.mrb[0].mxu0 %v328
  %v475 = vpop.f32.mrb[0].mxu0
  %v476 = vadd.f32 %v291, %v475
  %v477 = vpop.f32.mrb[0].mxu0
  %478 = vmatprep.mubr.f32.mxu0 0.0
  %479 = vmatmul.mubr.f32.gmra.mrb[0].mxu0 %v331
  %v480 = vpop.f32.mrb[0].mxu0
  %v481 = vadd.f32 %v291, %v480
  %v482 = vpop.f32.mrb[0].mxu0
  %483 = vmatprep.mubr.f32.mxu0 0.0
  %484 = vmatmul.mubr.f32.gmra.mrb[0].mxu0 %v334
  %v485 = vpop.f32.mrb[0].mxu0
  %v486 = vadd.f32 %v291, %v485
  %v487 = vpop.f32.mrb[0].mxu0
  %488 = vmatprep.mubr.f32.mxu0 0.0
  %489 = vmatmul.mubr.f32.gmra.mrb[0].mxu0 %v337
  %v490 = vpop.f32.mrb[0].mxu0
  %v491 = vadd.f32 %v291, %v490
  %v492 = vpop.f32.mrb[0].mxu0
  %493 = vmatprep.mubr.f32.mxu0 0.0
  %494 = vmatmul.mubr.f32.gmra.mrb[0].mxu0 %v340
  %v495 = vpop.f32.mrb[0].mxu0
  %v496 = vadd.f32 %v291, %v495
  %v497 = vpop.f32.mrb[0].mxu0
  %498 = vdwg.mxu0
  %v499 = vmax.f32 %v421, 0.0
  %v500 = vmax.f32 %v426, 0.0
  %v501 = vmax.f32 %v431, 0.0
  %v502 = vmax.f32 %v436, 0.0
  %v503 = vmax.f32 %v441, 0.0
  %v504 = vmax.f32 %v446, 0.0
  %v505 = vmax.f32 %v451, 0.0
  %v506 = vmax.f32 %v456, 0.0
  %v507 = vmax.f32 %v461, 0.0
  %v508 = vmax.f32 %v466, 0.0
  %v509 = vmax.f32 %v471, 0.0
  %v510 = vmax.f32 %v476, 0.0
  %v511 = vmax.f32 %v481, 0.0
  %v512 = vmax.f32 %v486, 0.0
  %v513 = vmax.f32 %v491, 0.0
  %v514 = vmax.f32 %v496, 0.0
  %v515 = vld [vmem:[%s5] sm:$0xff]
  %v516 = vld [vmem:[%s5 + $0x8] sm:$0xff]
  %v517 = vld [vmem:[%s5 + $0x10] sm:$0xff]
  %v518 = vld [vmem:[%s5 + $0x18] sm:$0xff]
  %v519 = vld [vmem:[%s6] sm:$0x1]
  %v521 = vlaneseq
  %v522 = vshrl.u32 %v521, 7
  %v523 = vsub.s32 0, %v522
  %v524 = vrot.slane %v519, %v523
  %v527 = vsel %vm293, %v499, 0
  %v530 = vsel %vm293, %v500, 0
  %v533 = vsel %vm293, %v501, 0
  %v536 = vsel %vm293, %v502, 0
  %v539 = vsel %vm293, %v503, 0
  %v542 = vsel %vm293, %v504, 0
  %v545 = vsel %vm293, %v505, 0
  %v548 = vsel %vm293, %v506, 0
  %v551 = vsel %vm293, %v507, 0
  %v554 = vsel %vm293, %v508, 0
  %v557 = vsel %vm293, %v509, 0
  %v560 = vsel %vm293, %v510, 0
  %v563 = vsel %vm293, %v511, 0
  %v566 = vsel %vm293, %v512, 0
  %v569 = vsel %vm293, %v513, 0
  %v572 = vsel %vm293, %v514, 0
  %v575 = vsel %vm293, %v515, 0
  %v578 = vsel %vm293, %v516, 0
  %v581 = vsel %vm293, %v517, 0
  %v584 = vsel %vm293, %v518, 0
  %586 = vmatprep.subr.mxu0 0.0
  %587 = vmatpush1.xpose.msra.mxu0 %v575
  %588 = vmatprep.subr.mxu0 0.0
  %589 = vmatpush1.xpose.msra.mxu0 %v578
  %590 = vmatprep.subr.mxu0 0.0
  %591 = vmatpush1.xpose.msra.mxu0 %v581
  %592 = vmatprep.subr.mxu0 0.0
  %593 = vmatpush1.xpose.msra.mxu0 %v584
  %594 = vmatprep.subr.mxu0 0.0
  %595 = vmatpush1.xpose.msra.mxu0 0.0
  %596 = vmatprep.subr.mxu0 0.0
  %597 = vmatpush1.xpose.msra.mxu0 0.0
  %598 = vmatprep.subr.mxu0 0.0
  %599 = vmatpush1.xpose.msra.mxu0 0.0
  %600 = vmatprep.subr.mxu0 0.0
  %601 = vmatpush1.xpose.msra.mxu0 0.0
  %602 = vmatprep.subr.mxu0 0.0
  %603 = vmatpush1.xpose.msra.mxu0 0.0
  %604 = vmatprep.subr.mxu0 0.0
  %605 = vmatpush1.xpose.msra.mxu0 0.0
  %606 = vmatprep.subr.mxu0 0.0
  %607 = vmatpush1.xpose.msra.mxu0 0.0
  %608 = vmatprep.subr.mxu0 0.0
  %609 = vmatpush1.xpose.msra.mxu0 0.0
  %610 = vmatprep.subr.mxu0 0.0
  %611 = vmatpush1.xpose.msra.mxu0 0.0
  %612 = vmatprep.subr.mxu0 0.0
  %613 = vmatpush1.xpose.msra.mxu0 0.0
  %614 = vmatprep.subr.mxu0 0.0
  %615 = vmatpush1.xpose.msra.mxu0 0.0
  %616 = vmatprep.subr.mxu0 0.0
  %617 = vmatpush1.xpose.msra.mxu0 0.0
  %618 = vmatprep.subr.mxu0 0.0
  %619 = vmatpush1.xpose.msra.mxu0 0.0
  %620 = vmatprep.subr.mxu0 0.0
  %621 = vmatpush1.xpose.msra.mxu0 0.0
  %622 = vmatprep.subr.mxu0 0.0
  %623 = vmatpush1.xpose.msra.mxu0 0.0
  %624 = vmatprep.subr.mxu0 0.0
  %625 = vmatpush1.xpose.msra.mxu0 0.0
  %626 = vmatprep.subr.mxu0 0.0
  %627 = vmatpush1.xpose.msra.mxu0 0.0
  %628 = vmatprep.subr.mxu0 0.0
  %629 = vmatpush1.xpose.msra.mxu0 0.0
  %630 = vmatprep.subr.mxu0 0.0
  %631 = vmatpush1.xpose.msra.mxu0 0.0
  %632 = vmatprep.subr.mxu0 0.0
  %633 = vmatpush1.xpose.msra.mxu0 0.0
  %634 = vmatprep.subr.mxu0 0.0
  %635 = vmatpush1.xpose.msra.mxu0 0.0
  %636 = vmatprep.subr.mxu0 0.0
  %637 = vmatpush1.xpose.msra.mxu0 0.0
  %638 = vmatprep.subr.mxu0 0.0
  %639 = vmatpush1.xpose.msra.mxu0 0.0
  %640 = vmatprep.subr.mxu0 0.0
  %641 = vmatpush1.xpose.msra.mxu0 0.0
  %642 = vmatprep.subr.mxu0 0.0
  %643 = vmatpush1.xpose.msra.mxu0 0.0
  %644 = vmatprep.subr.mxu0 0.0
  %645 = vmatpush1.xpose.msra.mxu0 0.0
  %646 = vmatprep.subr.mxu0 0.0
  %647 = vmatpush1.xpose.msra.mxu0 0.0
  %648 = vmatprep.subr.mxu0 0.0
  %649 = vmatpush1.xpose.msra.mxu0 0.0
  %650 = vmatprep.mubr.f32.mxu0 0.0
  %651 = vmatmul.mubr.f32.gmra.mrb[0].mxu0 %v527
  %v652 = vpop.f32.mrb[0].mxu0
  %v653 = vadd.f32 %v524, %v652
  %v654 = vpop.f32.mrb[0].mxu0
  %655 = vmatprep.mubr.f32.mxu0 0.0
  %656 = vmatmul.mubr.f32.gmra.mrb[0].mxu0 %v530
  %v657 = vpop.f32.mrb[0].mxu0
  %v658 = vadd.f32 %v524, %v657
  %v659 = vpop.f32.mrb[0].mxu0
  %660 = vmatprep.mubr.f32.mxu0 0.0
  %661 = vmatmul.mubr.f32.gmra.mrb[0].mxu0 %v533
  %v662 = vpop.f32.mrb[0].mxu0
  %v663 = vadd.f32 %v524, %v662
  %v664 = vpop.f32.mrb[0].mxu0
  %665 = vmatprep.mubr.f32.mxu0 0.0
  %666 = vmatmul.mubr.f32.gmra.mrb[0].mxu0 %v536
  %v667 = vpop.f32.mrb[0].mxu0
  %v668 = vadd.f32 %v524, %v667
  %v669 = vpop.f32.mrb[0].mxu0
  %670 = vmatprep.mubr.f32.mxu0 0.0
  %671 = vmatmul.mubr.f32.gmra.mrb[0].mxu0 %v539
  %v672 = vpop.f32.mrb[0].mxu0
  %v673 = vadd.f32 %v524, %v672
  %v674 = vpop.f32.mrb[0].mxu0
  %675 = vmatprep.mubr.f32.mxu0 0.0
  %676 = vmatmul.mubr.f32.gmra.mrb[0].mxu0 %v542
  %v677 = vpop.f32.mrb[0].mxu0
  %v678 = vadd.f32 %v524, %v677
  %v679 = vpop.f32.mrb[0].mxu0
  %680 = vmatprep.mubr.f32.mxu0 0.0
  %681 = vmatmul.mubr.f32.gmra.mrb[0].mxu0 %v545
  %v682 = vpop.f32.mrb[0].mxu0
  %v683 = vadd.f32 %v524, %v682
  %v684 = vpop.f32.mrb[0].mxu0
  %685 = vmatprep.mubr.f32.mxu0 0.0
  %686 = vmatmul.mubr.f32.gmra.mrb[0].mxu0 %v548
  %v687 = vpop.f32.mrb[0].mxu0
  %v688 = vadd.f32 %v524, %v687
  %v689 = vpop.f32.mrb[0].mxu0
  %690 = vmatprep.mubr.f32.mxu0 0.0
  %691 = vmatmul.mubr.f32.gmra.mrb[0].mxu0 %v551
  %v692 = vpop.f32.mrb[0].mxu0
  %v693 = vadd.f32 %v524, %v692
  %v694 = vpop.f32.mrb[0].mxu0
  %695 = vmatprep.mubr.f32.mxu0 0.0
  %696 = vmatmul.mubr.f32.gmra.mrb[0].mxu0 %v554
  %v697 = vpop.f32.mrb[0].mxu0
  %v698 = vadd.f32 %v524, %v697
  %v699 = vpop.f32.mrb[0].mxu0
  %700 = vmatprep.mubr.f32.mxu0 0.0
  %701 = vmatmul.mubr.f32.gmra.mrb[0].mxu0 %v557
  %v702 = vpop.f32.mrb[0].mxu0
  %v703 = vadd.f32 %v524, %v702
  %v704 = vpop.f32.mrb[0].mxu0
  %705 = vmatprep.mubr.f32.mxu0 0.0
  %706 = vmatmul.mubr.f32.gmra.mrb[0].mxu0 %v560
  %v707 = vpop.f32.mrb[0].mxu0
  %v708 = vadd.f32 %v524, %v707
  %v709 = vpop.f32.mrb[0].mxu0
  %710 = vmatprep.mubr.f32.mxu0 0.0
  %711 = vmatmul.mubr.f32.gmra.mrb[0].mxu0 %v563
  %v712 = vpop.f32.mrb[0].mxu0
  %v713 = vadd.f32 %v524, %v712
  %v714 = vpop.f32.mrb[0].mxu0
  %715 = vmatprep.mubr.f32.mxu0 0.0
  %716 = vmatmul.mubr.f32.gmra.mrb[0].mxu0 %v566
  %v717 = vpop.f32.mrb[0].mxu0
  %v718 = vadd.f32 %v524, %v717
  %v719 = vpop.f32.mrb[0].mxu0
  %720 = vmatprep.mubr.f32.mxu0 0.0
  %721 = vmatmul.mubr.f32.gmra.mrb[0].mxu0 %v569
  %v722 = vpop.f32.mrb[0].mxu0
  %v723 = vadd.f32 %v524, %v722
  %v724 = vpop.f32.mrb[0].mxu0
  %725 = vmatprep.mubr.f32.mxu0 0.0
  %726 = vmatmul.mubr.f32.gmra.mrb[0].mxu0 %v572
  %v727 = vpop.f32.mrb[0].mxu0
  %v728 = vadd.f32 %v524, %v727
  %v729 = vpop.f32.mrb[0].mxu0
  %730 = vdwg.mxu0
  %v731 = vmax.f32 %v653, 0.0
  %v732 = vmax.f32 %v658, 0.0
  %v733 = vmax.f32 %v663, 0.0
  %v734 = vmax.f32 %v668, 0.0
  %v735 = vmax.f32 %v673, 0.0
  %v736 = vmax.f32 %v678, 0.0
  %v737 = vmax.f32 %v683, 0.0
  %v738 = vmax.f32 %v688, 0.0
  %v739 = vmax.f32 %v693, 0.0
  %v740 = vmax.f32 %v698, 0.0
  %v741 = vmax.f32 %v703, 0.0
  %v742 = vmax.f32 %v708, 0.0
  %v743 = vmax.f32 %v713, 0.0
  %v744 = vmax.f32 %v718, 0.0
  %v745 = vmax.f32 %v723, 0.0
  %v746 = vmax.f32 %v728, 0.0
  %v747 = vld [vmem:[%s7] sm:$0x1]
  %s748 = sld [smem:[#allocation2]]
  %v749 = vstv %s748
  %v751 = vsel %vm293, %v747, 0
  %v754 = vsel %vm293, %v731, 0
  %v757 = vsel %vm293, %v732, 0
  %v760 = vsel %vm293, %v733, 0
  %v763 = vsel %vm293, %v734, 0
  %v766 = vsel %vm293, %v735, 0
  %v769 = vsel %vm293, %v736, 0
  %v772 = vsel %vm293, %v737, 0
  %v775 = vsel %vm293, %v738, 0
  %v778 = vsel %vm293, %v739, 0
  %v781 = vsel %vm293, %v740, 0
  %v784 = vsel %vm293, %v741, 0
  %v787 = vsel %vm293, %v742, 0
  %v790 = vsel %vm293, %v743, 0
  %v793 = vsel %vm293, %v744, 0
  %v796 = vsel %vm293, %v745, 0
  %v799 = vsel %vm293, %v746, 0
  %801 = vmatprep.subr.mxu0 0.0
  %802 = vmatpush1.xpose.msra.mxu0 %v754
  %803 = vmatprep.subr.mxu0 0.0
  %804 = vmatpush1.xpose.msra.mxu0 %v757
  %805 = vmatprep.subr.mxu0 0.0
  %806 = vmatpush1.xpose.msra.mxu0 %v760
  %807 = vmatprep.subr.mxu0 0.0
  %808 = vmatpush1.xpose.msra.mxu0 %v763
  %809 = vmatprep.subr.mxu0 0.0
  %810 = vmatpush1.xpose.msra.mxu0 %v766
  %811 = vmatprep.subr.mxu0 0.0
  %812 = vmatpush1.xpose.msra.mxu0 %v769
  %813 = vmatprep.subr.mxu0 0.0
  %814 = vmatpush1.xpose.msra.mxu0 %v772
  %815 = vmatprep.subr.mxu0 0.0
  %816 = vmatpush1.xpose.msra.mxu0 %v775
  %817 = vmatprep.subr.mxu0 0.0
  %818 = vmatpush1.xpose.msra.mxu0 %v778
  %819 = vmatprep.subr.mxu0 0.0
  %820 = vmatpush1.xpose.msra.mxu0 %v781
  %821 = vmatprep.subr.mxu0 0.0
  %822 = vmatpush1.xpose.msra.mxu0 %v784
  %823 = vmatprep.subr.mxu0 0.0
  %824 = vmatpush1.xpose.msra.mxu0 %v787
  %825 = vmatprep.subr.mxu0 0.0
  %826 = vmatpush1.xpose.msra.mxu0 %v790
  %827 = vmatprep.subr.mxu0 0.0
  %828 = vmatpush1.xpose.msra.mxu0 %v793
  %829 = vmatprep.subr.mxu0 0.0
  %830 = vmatpush1.xpose.msra.mxu0 %v796
  %831 = vmatprep.subr.mxu0 0.0
  %832 = vmatpush1.xpose.msra.mxu0 %v799
  %833 = vmatprep.subr.mxu0 0.0
  %834 = vmatpush1.xpose.msra.mxu0 0.0
  %835 = vmatprep.subr.mxu0 0.0
  %836 = vmatpush1.xpose.msra.mxu0 0.0
  %837 = vmatprep.subr.mxu0 0.0
  %838 = vmatpush1.xpose.msra.mxu0 0.0
  %839 = vmatprep.subr.mxu0 0.0
  %840 = vmatpush1.xpose.msra.mxu0 0.0
  %841 = vmatprep.subr.mxu0 0.0
  %842 = vmatpush1.xpose.msra.mxu0 0.0
  %843 = vmatprep.subr.mxu0 0.0
  %844 = vmatpush1.xpose.msra.mxu0 0.0
  %845 = vmatprep.subr.mxu0 0.0
  %846 = vmatpush1.xpose.msra.mxu0 0.0
  %847 = vmatprep.subr.mxu0 0.0
  %848 = vmatpush1.xpose.msra.mxu0 0.0
  %849 = vmatprep.subr.mxu0 0.0
  %850 = vmatpush1.xpose.msra.mxu0 0.0
  %851 = vmatprep.subr.mxu0 0.0
  %852 = vmatpush1.xpose.msra.mxu0 0.0
  %853 = vmatprep.subr.mxu0 0.0
  %854 = vmatpush1.xpose.msra.mxu0 0.0
  %855 = vmatprep.subr.mxu0 0.0
  %856 = vmatpush1.xpose.msra.mxu0 0.0
  %857 = vmatprep.subr.mxu0 0.0
  %858 = vmatpush1.xpose.msra.mxu0 0.0
  %859 = vmatprep.subr.mxu0 0.0
  %860 = vmatpush1.xpose.msra.mxu0 0.0
  %861 = vmatprep.subr.mxu0 0.0
  %862 = vmatpush1.xpose.msra.mxu0 0.0
  %863 = vmatprep.subr.mxu0 0.0
  %864 = vmatpush1.xpose.msra.mxu0 0.0
  %865 = vmatprep.mubr.f32.mxu0 0.0
  %866 = vmatmul.mubr.f32.gmra.mrb[0].mxu0 %v751
  %v867 = vpop.f32.mrb[0].mxu0
  %v868 = vadd.f32 %v749, %v867
  %v869 = vpop.f32.mrb[0].mxu0
  %870 = vdwg.mxu0
  %871 = vst [vmem:[%s9] sm:$0x1] %v868
  // Predicated region
  $region38: #{_forward.1} parent=0 // pred_check
    _
  $region39: #{_forward.1} parent=0 // pred_check_branch
    %873 = sbr.rel (0) target = $region41
  $region40: #{_forward.1} parent=0 // pred_region
    _
  $region41: #{_forward.1} parent=0 // pred_fallthru
    _
  // Predicated region
  $region42: #{_forward.1} parent=0 // pred_check
    _
  $region43: #{_forward.1} parent=0 // pred_check_branch
    %875 = sbr.rel (0) target = $region45
  $region44: #{_forward.1} parent=0 // pred_region
    _
  $region45: #{_forward.1} parent=0 // pred_fallthru
    _

</llo_original>
